<compile_context>
chip_gen: v7x
topology: tpu7x:2x2x1
jax: 0.10.0
libtpu: 0.0.40
codegen_flags: <defaults>
</compile_context>

<pallas_src>
import jax
import jax.numpy as jnp
from jax.experimental import pallas as pl
from jax.experimental.pallas import tpu as pltpu

LN2 = 0.6931471824645996  # float32 log(2), matches torch/np log(2.) in fp32


def _shifted_softplus(x):
    # softplus(x) - log(2), numerically stable
    return jnp.logaddexp(x, 0.0) - LN2


def _round_up(x, m):
    return (x + m - 1) // m * m


def _cdiv(a, b):
    return (a + b - 1) // b


def _vmem_block_bytes(rows, cols, dtype):
    """VMEM footprint of a (rows, cols) block including (sublane, 128-lane) padding."""
    item = jnp.dtype(dtype).itemsize
    sublane = max(8, 32 // item)  # f32 -> 8, bf16 -> 16 (sublane-packed)
    return _round_up(max(rows, 1), sublane) * _round_up(max(cols, 1), 128) * item


def _vmem_estimate(tm, f, h, x_dtype, weights_double_buffered):
    """Lane-padding-aware VMEM estimate for one pipelined grid step."""
    wbuf = 2 if weights_double_buffered else 1
    est = 0
    est += 2 * _vmem_block_bytes(tm, f, x_dtype)                 # x stream (double-buffered)
    est += 2 * _vmem_block_bytes(1, tm, jnp.float32)             # y0 stream
    est += 2 * _vmem_block_bytes(1, tm, jnp.float32)             # yi output stream
    est += wbuf * (_vmem_block_bytes(f, h, jnp.float32)          # resident weights
                   + 2 * _vmem_block_bytes(1, h, jnp.float32))
    # in-kernel temporaries: x upcast to f32, h, plus a transposed copy for dense-2
    est += _vmem_block_bytes(tm, f, jnp.float32)
    est += 2 * _vmem_block_bytes(tm, h, jnp.float32)
    return est


def atomwise_kernel(x_ref, w1_ref, b1_ref, w2_ref, y0_ref, yi_ref):
    """One row tile: Dense(F->H)+ssp, then folded Dense(H->1)+ScaleShift+atomref.

    x_ref  : (TM, F)  flattened (batch*atom) representation rows (bf16 stream)
    w1_ref : (F, H)   dense-1 weight (resident, f32)
    b1_ref : (1, H)   dense-1 bias   (resident, f32)
    w2_ref : (1, H)   dense-2 weight pre-scaled by stddev (resident, f32)
    y0_ref : (1, TM)  atomref[Z] + b2*stddev + mean, lane-dense
    yi_ref : (1, TM)  atom-wise contributions, lane-dense output
    """
    # Upcast the bf16 stream immediately; all math stays f32 (v5e has no bf16 VPU/EUP).
    x = x_ref[...].astype(jnp.float32)

    # --- MLP layer 1: one 2-D MXU matmul + shifted_softplus ---
    h = jnp.dot(x, w1_ref[...], preferred_element_type=jnp.float32)
    h = _shifted_softplus(h + b1_ref[...])                       # (TM, H)

    # --- MLP layer 2 (n_out == 1): contraction that keeps rows on lanes ---
    # (1, H) x (TM, H) -> (1, TM); avoids a lane-width-1 (TM, 1) result tile and
    # the masked partial stores it would imply. Compute has ample slack here
    # (kernel is HBM-bound), so the implicit h transpose is free filler.
    yi = jnp.einsum("oh,mh->om", w2_ref[...], h,
                    preferred_element_type=jnp.float32)          # (1, TM)

    # --- folded ScaleShift + bias-2 + atomref, lane-dense store ---
    yi_ref[...] = yi + y0_ref[...]


def atomwise_forward(x, z, atom_mask, params, *, x_stream_dtype=jnp.bfloat16,
                     target_tile_bytes=2 << 20, vmem_budget=40 << 20):
    """Wrapper: trace-time parameter folds, atomref gather, pallas_call, pooling.

    Returns dict {"y": (B, n_out), "contributions": (B, A, n_out)}.
    """
    B, A, F = x.shape
    H = params["w1"].shape[1]
    n_out = params["w2"].shape[1]
    assert n_out == 1, "kernel specialised for the module default n_out=1"
    f32 = jnp.float32

    N = B * A
    N_128 = _round_up(N, 128)
    x_itemsize = jnp.dtype(x_stream_dtype).itemsize

    # Single-buffer the resident weights only when they are big enough to matter
    # (real pyramidal model with F in the thousands on v7x's 64 MiB VMEM).
    single_buffer_weights = _vmem_block_bytes(F, H, f32) > (4 << 20)

    # --- row-tile size: big enough to amortize the ~0.35 us per-step cost,
    #     bounded by the lane-padding-aware VMEM footprint.
    TM = _round_up(max(128, min(16384, target_tile_bytes // max(F * x_itemsize, 1))), 128)
    while TM > 128 and _vmem_estimate(TM, F, H, x_stream_dtype,
                                      not single_buffer_weights) > vmem_budget:
        TM = max(128, _round_up(TM // 2, 128))

    # --- ragged-friendly grid: pad to G*TM with TM ~= ceil(N_128/G), so wasted
    #     rows are bounded by ~128 per tile instead of up to TM-1.
    G = _cdiv(N_128, TM)
    if G == 1 and N_128 >= 256:
        G = 2                      # give v7x's two TensorCores a tile each
    elif G > 1 and G % 2 == 1:
        G += 1                     # even tile count for megacore sharding
    TM = max(128, _round_up(_cdiv(N_128, G), 128))
    N_pad = G * TM

    stddev = jnp.asarray(params["stddev"], f32)
    mean = jnp.asarray(params["mean"], f32)

    # --- trace-time folds (parameter-sized work only, not per-element) ---
    w1 = params["w1"].astype(f32)                                   # (F, H)
    b1 = params["b1"].astype(f32).reshape(1, H)                     # (1, H)
    w2_eff = (params["w2"].astype(f32) * stddev).reshape(1, H)      # (1, H)
    const = params["b2"].astype(f32).reshape(()) * stddev + mean    # scalar

    # atomref gather (tiny), folded with the scalar epilogue constant.
    if params["atomref"] is not None:
        y0 = jnp.take(params["atomref"].astype(f32)[:, 0], z.reshape(-1))  # (N,)
    else:
        y0 = jnp.zeros((N,), f32)
    y0_eff = (y0 + const).reshape(1, N)
    y0_eff = jnp.pad(y0_eff, ((0, 0), (0, N_pad - N)))              # (1, N_pad)

    # bf16 stream for the dominant HBM read (halves x bytes on all gens).
    x2 = x.reshape(N, F).astype(x_stream_dtype)
    x2 = jnp.pad(x2, ((0, N_pad - N), (0, 0)))                      # (N_pad, F)

    # --- VMEM budget with lane padding + double-buffering accounted for ---
    est = _vmem_estimate(TM, F, H, x_stream_dtype, not single_buffer_weights)
    vmem_limit = int(min(56 << 20, max(32 << 20, est + (12 << 20))))

    cost = pl.CostEstimate(
        flops=2 * N_pad * F * H + 2 * N_pad * H,
        transcendentals=2 * N_pad * H,                              # exp+log in softplus
        bytes_accessed=N_pad * F * x_itemsize + 2 * N_pad * 4 + (F * H + 2 * H) * 4,
    )

    if single_buffer_weights:
        wspec_kwargs = dict(pipeline_mode=pl.Buffered(1))           # keep w1 single-buffered
    else:
        wspec_kwargs = {}

    in_specs = [
        pl.BlockSpec((TM, F), lambda i: (i, 0)),                    # x row tile (streamed)
        pl.BlockSpec((F, H), lambda i: (0, 0), **wspec_kwargs),     # w1 (resident)
        pl.BlockSpec((1, H), lambda i: (0, 0), **wspec_kwargs),     # b1 (resident)
        pl.BlockSpec((1, H), lambda i: (0, 0), **wspec_kwargs),     # w2 * stddev (resident)
        pl.BlockSpec((1, TM), lambda i: (0, i)),                    # atomref + b2*stddev + mean
    ]

    yi_row = pl.pallas_call(
        atomwise_kernel,
        out_shape=jax.ShapeDtypeStruct((1, N_pad), f32),
        grid=(G,),
        in_specs=in_specs,
        out_specs=pl.BlockSpec((1, TM), lambda i: (0, i)),          # lane-dense contributions
        compiler_params=pltpu.CompilerParams(
            dimension_semantics=("parallel",),                      # megacore sharding on v7x
            vmem_limit_bytes=vmem_limit,
        ),
        cost_estimate=cost,
    )(x2, w1, b1, w2_eff, y0_eff)

    yi = yi_row[0, :N].reshape(B, A, n_out)                          # contributions
    # Aggregate(axis=1, mean=False) with atom mask: tiny XLA reduce over (B, A, 1).
    y = jnp.sum(yi * atom_mask.astype(f32)[..., None], axis=1)       # (B, n_out)

    # TODO(synk): `derivative` branch (autograd w.r.t. positions) not implemented;
    # with the module default derivative=None it is never executed (it would be
    # jax.grad around this wrapper, not an in-kernel op).
    return {"y": y, "contributions": yi}


def atomwise_ref(x, z, atom_mask, params):
    """Pure-JAX reference of the PyTorch forward (full f32)."""
    h = _shifted_softplus(x @ params["w1"] + params["b1"])
    yi = h @ params["w2"] + params["b2"]
    yi = yi * params["stddev"] + params["mean"]
    if params["atomref"] is not None:
        yi = yi + jnp.take(params["atomref"], z, axis=0)
    y = jnp.sum(yi * atom_mask.astype(jnp.float32)[..., None], axis=1)
    return {"y": y, "contributions": yi}


if __name__ == "__main__":
    # Small shapes consistent with the module: batch=2, atoms=8, n_in=32.
    B, A, n_in, n_out = 2, 8, 32, 1
    hidden = n_in // 2          # pyramidal MLP, n_layers=2
    max_z = 20

    key = jax.random.PRNGKey(0)
    k_x, k_w1, k_b1, k_w2, k_b2 = jax.random.split(key, 5)

    # Inputs
    x = jax.random.normal(k_x, (B, A, n_in), jnp.float32)           # representation
    z = jnp.array([[1, 6, 6, 8, 1, 1, 7, 6],
                   [6, 8, 1, 1, 7, 0, 0, 0]], jnp.int32)             # atomic numbers
    atom_mask = jnp.array([[1, 1, 1, 1, 1, 1, 1, 1],
                           [1, 1, 1, 1, 1, 0, 0, 0]], jnp.float32)   # padded atoms masked

    # Deterministic synthetic parameters (shapes from Atomwise.__init__)
    atomref_tbl = 0.1 * jnp.arange(max_z + 1, dtype=jnp.float32)[:, None]  # (max_z+1, 1)
    atomref_tbl = atomref_tbl.at[0].set(0.0)                               # mask-atom ref = 0
    params = {
        "w1": 0.1 * jax.random.normal(k_w1, (n_in, hidden), jnp.float32),
        "b1": 0.1 * jax.random.normal(k_b1, (1, hidden), jnp.float32),
        "w2": 0.1 * jax.random.normal(k_w2, (hidden, n_out), jnp.float32),
        "b2": 0.1 * jax.random.normal(k_b2, (1, n_out), jnp.float32),
        "mean": 0.5,       # ScaleShift mean
        "stddev": 2.0,     # ScaleShift stddev
        "atomref": atomref_tbl,
    }

    out = atomwise_forward(x, z, atom_mask, params)
    jax.block_until_ready(out)

    ref = atomwise_ref(x, z, atom_mask, params)
    # Tolerance relaxed vs pure-f32 because x is streamed in bfloat16.
    assert jnp.allclose(out["y"], ref["y"], atol=2e-2, rtol=2e-2)
    assert jnp.allclose(out["contributions"], ref["contributions"],
                        atol=2e-2, rtol=2e-2)

    print("KERNEL_OK")
</pallas_src>

<mosaic_0001>
module attributes {stable_mosaic.version = 11 : i64} {
  func.func @atomwise_kernel(%arg0: i32, %arg1: memref<128x32xbf16, #tpu.memory_space<vmem>>, %arg2: memref<32x16xf32, #tpu.memory_space<vmem>>, %arg3: memref<1x16xf32, #tpu.memory_space<vmem>>, %arg4: memref<1x16xf32, #tpu.memory_space<vmem>>, %arg5: memref<1x128xf32, #tpu.memory_space<vmem>>, %arg6: memref<1x128xf32, #tpu.memory_space<vmem>>) attributes {dimension_semantics = [#tpu.dimension_semantics<parallel>], iteration_bounds = array<i64: 1>, scalar_prefetch = 0 : i64, scratch_operands = 0 : i64, tpu.core_type = #tpu.core_type<tc>, window_params = [{transform_indices = @transform_0, window_bounds = array<i64: 128, 32>}, {pipeline_mode = #tpu.pipeline_mode<synchronous>, transform_indices = @transform_1, window_bounds = array<i64: 32, 16>}, {pipeline_mode = #tpu.pipeline_mode<synchronous>, transform_indices = @transform_2, window_bounds = array<i64: 1, 16>}, {pipeline_mode = #tpu.pipeline_mode<synchronous>, transform_indices = @transform_3, window_bounds = array<i64: 1, 16>}, {transform_indices = @transform_4, window_bounds = array<i64: 1, 128>}, {transform_indices = @transform_5, window_bounds = array<i64: 1, 128>}]} {
    %c0 = arith.constant 0 : index
    %c0_0 = arith.constant 0 : index
    %0 = vector.load %arg1[%c0, %c0_0] : memref<128x32xbf16, #tpu.memory_space<vmem>>, vector<128x32xbf16>
    %1 = arith.extf %0 : vector<128x32xbf16> to vector<128x32xf32>
    %c0_1 = arith.constant 0 : index
    %c0_2 = arith.constant 0 : index
    %2 = vector.load %arg2[%c0_1, %c0_2] : memref<32x16xf32, #tpu.memory_space<vmem>>, vector<32x16xf32>
    %cst = arith.constant dense<0.000000e+00> : vector<128x16xf32>
    %3 = tpu.matmul %1, %2, %cst {dimension_numbers = #tpu.dot_dimension_numbers<[1], [0], [0], [1], [0, 0, 1, 1], [], []>} : vector<128x32xf32>, vector<32x16xf32>, vector<128x16xf32> -> vector<128x16xf32>
    %c0_3 = arith.constant 0 : index
    %c0_4 = arith.constant 0 : index
    %4 = vector.load %arg3[%c0_3, %c0_4] : memref<1x16xf32, #tpu.memory_space<vmem>>, vector<1x16xf32>
    %5 = vector.broadcast %4 : vector<1x16xf32> to vector<128x16xf32>
    %6 = arith.addf %3, %5 : vector<128x16xf32>
    %cst_5 = arith.constant 0.000000e+00 : f32
    %7 = vector.broadcast %cst_5 : f32 to vector<128x16xf32>
    %8 = arith.maximumf %6, %7 : vector<128x16xf32>
    %9 = vector.broadcast %cst_5 : f32 to vector<128x16xf32>
    %10 = arith.subf %6, %9 : vector<128x16xf32>
    %11 = arith.cmpf one, %10, %10 : vector<128x16xf32>
    %12 = vector.broadcast %cst_5 : f32 to vector<128x16xf32>
    %13 = arith.addf %6, %12 : vector<128x16xf32>
    %14 = math.absf %10 : vector<128x16xf32>
    %cst_6 = arith.constant 0.000000e+00 : f32
    %15 = vector.broadcast %cst_6 : f32 to vector<128x16xf32>
    %16 = arith.subf %15, %14 : vector<128x16xf32>
    %17 = math.exp %16 : vector<128x16xf32>
    %18 = math.log1p %17 : vector<128x16xf32>
    %19 = arith.addf %8, %18 : vector<128x16xf32>
    %20 = arith.select %11, %13, %19 : vector<128x16xi1>, vector<128x16xf32>
    %cst_7 = arith.constant 0.693147182 : f32
    %21 = vector.broadcast %cst_7 : f32 to vector<128x16xf32>
    %22 = arith.subf %20, %21 : vector<128x16xf32>
    %c0_8 = arith.constant 0 : index
    %c0_9 = arith.constant 0 : index
    %23 = vector.load %arg4[%c0_8, %c0_9] : memref<1x16xf32, #tpu.memory_space<vmem>>, vector<1x16xf32>
    "tpu.trace_start"() <{level = 10 : i32, message = "oh,mh->om"}> : () -> ()
    %cst_10 = arith.constant dense<0.000000e+00> : vector<1x128xf32>
    %24 = tpu.matmul %23, %22, %cst_10 {dimension_numbers = #tpu.dot_dimension_numbers<[1], [1], [0], [0], [0, 0, 1, 0], [], []>} : vector<1x16xf32>, vector<128x16xf32>, vector<1x128xf32> -> vector<1x128xf32>
    "tpu.trace_stop"() : () -> ()
    %c0_11 = arith.constant 0 : index
    %c0_12 = arith.constant 0 : index
    %25 = vector.load %arg5[%c0_11, %c0_12] : memref<1x128xf32, #tpu.memory_space<vmem>>, vector<1x128xf32>
    %26 = arith.addf %24, %25 : vector<1x128xf32>
    %c0_13 = arith.constant 0 : index
    %c0_14 = arith.constant 0 : index
    %27 = vector.load %arg6[%c0_13, %c0_14] : memref<1x128xf32, #tpu.memory_space<vmem>>, vector<1x128xf32>
    tpu.vector_store %arg6[%c0_13, %c0_14], %26 {strides = array<i32>} : memref<1x128xf32, #tpu.memory_space<vmem>>, vector<1x128xf32>,
    return
  }
  func.func @transform_0(%arg0: i32) -> (i32, i32) {
    %c0_i32 = arith.constant 0 : i32
    %c0_i32_0 = arith.constant 0 : i32
    return %arg0, %c0_i32 : i32, i32
  }
  func.func @transform_1(%arg0: i32) -> (i32, i32) {
    %c0_i32 = arith.constant 0 : i32
    %c0_i32_0 = arith.constant 0 : i32
    %c0_i32_1 = arith.constant 0 : i32
    return %c0_i32, %c0_i32_0 : i32, i32
  }
  func.func @transform_2(%arg0: i32) -> (i32, i32) {
    %c0_i32 = arith.constant 0 : i32
    %c0_i32_0 = arith.constant 0 : i32
    %c0_i32_1 = arith.constant 0 : i32
    return %c0_i32, %c0_i32_0 : i32, i32
  }
  func.func @transform_3(%arg0: i32) -> (i32, i32) {
    %c0_i32 = arith.constant 0 : i32
    %c0_i32_0 = arith.constant 0 : i32
    %c0_i32_1 = arith.constant 0 : i32
    return %c0_i32, %c0_i32_0 : i32, i32
  }
  func.func @transform_4(%arg0: i32) -> (i32, i32) {
    %c0_i32 = arith.constant 0 : i32
    %c0_i32_0 = arith.constant 0 : i32
    return %c0_i32, %arg0 : i32, i32
  }
  func.func @transform_5(%arg0: i32) -> (i32, i32) {
    %c0_i32 = arith.constant 0 : i32
    %c0_i32_0 = arith.constant 0 : i32
    return %c0_i32, %arg0 : i32, i32
  }
}

</mosaic_0001>

<llo_original>
// kernel: tpu_custom_call.1
$region0: #{tpu_custom_call.1}
  #allocation0 [shape = 'u32[]', space=smem, size = 0x4, offset = 0x4, fixed_abs, tag = 'smem constant byte address 0x4 - core index']
  #allocation1 [shape = 'u32[144,128]{1,0:T(1,128)}', space=vmem, size = 0x12000, scoped, tag = 'internal scratch']
  %s0 = inlined_call_operand.vmem [shape: bf16[128,32], index: 0, kind: input, shape index: {}]
  %s1 = inlined_call_operand.vmem [shape: f32[32,16], index: 1, kind: input, shape index: {}]
  %s2 = inlined_call_operand.vmem [shape: f32[1,16], index: 2, kind: input, shape index: {}]
  %s3 = inlined_call_operand.vmem [shape: f32[1,16], index: 3, kind: input, shape index: {}]
  %s4 = inlined_call_operand.vmem [shape: f32[1,128], index: 4, kind: input, shape index: {}]
  %s5 = inlined_call_operand.hbm [shape: f32[1,128], index: 5, kind: output, shape index: {}]
  %s6 = sld [smem:[#allocation0]]
  $region30: #{tpu_custom_call.1} parent=0
    _
  %s8 = ssub.s32 1, %s6
  %s9 = scalar_select 0, %s8, %s6
  $region1: #{tpu_custom_call.1} parent=0
    #allocation2 [shape = 'u8[512]{0}', space=vmem, size = 0x400, scoped, tag = 'output window, operand 0, single buffered']
    #allocation3 [shape = 's32[1]{0}', space=sflag, size = 0x4, scoped, tag = 'scoped memory for tpu_custom_call.1']
    %10 = vsyncpa [#allocation3], 0
    // Predicated region
    $region2: #{tpu_custom_call.1} parent=1 // pred_check
      _
    $region3: #{tpu_custom_call.1} parent=1 // pred_check_branch
      %12 = sbr.rel (0) target = $region5
    $region4: #{tpu_custom_call.1} parent=1 // pred_region
      _
    $region5: #{tpu_custom_call.1} parent=1 // pred_fallthru
      _
    // Predicated region
    $region6: #{tpu_custom_call.1} parent=1 // pred_check
      _
    $region7: #{tpu_custom_call.1} parent=1 // pred_check_branch
      %14 = sbr.rel (0) target = $region9
    $region8: #{tpu_custom_call.1} parent=1 // pred_region
      _
    $region9: #{tpu_custom_call.1} parent=1 // pred_fallthru
      _
    // Predicated region
    $region10: #{tpu_custom_call.1} parent=1 // pred_check
      _
    $region11: #{tpu_custom_call.1} parent=1 // pred_check_branch
      %16 = sbr.rel (0) target = $region13
    $region12: #{tpu_custom_call.1} parent=1 // pred_region
      _
    $region13: #{tpu_custom_call.1} parent=1 // pred_fallthru
      _
    // Predicated region
    $region14: #{tpu_custom_call.1} parent=1 // pred_check
      _
    $region15: #{tpu_custom_call.1} parent=1 // pred_check_branch
      %18 = sbr.rel (0) target = $region17
    $region16: #{tpu_custom_call.1} parent=1 // pred_region
      _
    $region17: #{tpu_custom_call.1} parent=1 // pred_fallthru
      _
    // Predicated region
    $region18: #{tpu_custom_call.1} parent=1 // pred_check
      _
    $region19: #{tpu_custom_call.1} parent=1 // pred_check_branch
      %20 = sbr.rel (0) target = $region21
    $region20: #{tpu_custom_call.1} parent=1 // pred_region
      _
    $region21: #{tpu_custom_call.1} parent=1 // pred_fallthru
      _
    %v21 = vld [vmem:[%s0] sm:$0xf]
    %v22 = vld [vmem:[%s0 + $0x4] sm:$0xf]
    %v23 = vld [vmem:[%s0 + $0x8] sm:$0xf]
    %v24 = vld [vmem:[%s0 + $0xc] sm:$0xf]
    %v25 = vld [vmem:[%s0 + $0x10] sm:$0xf]
    %v26 = vld [vmem:[%s0 + $0x14] sm:$0xf]
    %v27 = vld [vmem:[%s0 + $0x18] sm:$0xf]
    %v28 = vld [vmem:[%s0 + $0x1c] sm:$0xf]
    %v29 = vld [vmem:[%s0 + $0x20] sm:$0xf]
    %v30 = vld [vmem:[%s0 + $0x24] sm:$0xf]
    %v31 = vld [vmem:[%s0 + $0x28] sm:$0xf]
    %v32 = vld [vmem:[%s0 + $0x2c] sm:$0xf]
    %v33 = vld [vmem:[%s0 + $0x30] sm:$0xf]
    %v34 = vld [vmem:[%s0 + $0x34] sm:$0xf]
    %v35 = vld [vmem:[%s0 + $0x38] sm:$0xf]
    %v36 = vld [vmem:[%s0 + $0x3c] sm:$0xf]
    %v37 = vunpack.c.l.bf16 %v21
    %v38 = vunpack.c.l.bf16 %v22
    %v39 = vunpack.c.l.bf16 %v23
    %v40 = vunpack.c.l.bf16 %v24
    %v41 = vunpack.c.l.bf16 %v25
    %v42 = vunpack.c.l.bf16 %v26
    %v43 = vunpack.c.l.bf16 %v27
    %v44 = vunpack.c.l.bf16 %v28
    %v45 = vunpack.c.l.bf16 %v29
    %v46 = vunpack.c.l.bf16 %v30
    %v47 = vunpack.c.l.bf16 %v31
    %v48 = vunpack.c.l.bf16 %v32
    %v49 = vunpack.c.l.bf16 %v33
    %v50 = vunpack.c.l.bf16 %v34
    %v51 = vunpack.c.l.bf16 %v35
    %v52 = vunpack.c.l.bf16 %v36
    %v53 = vld [vmem:[%s1] sm:$0xff]
    %v54 = vld [vmem:[%s1 + $0x8] sm:$0xff]
    %v55 = vld [vmem:[%s1 + $0x10] sm:$0xff]
    %v56 = vld [vmem:[%s1 + $0x18] sm:$0xff]
    %v57 = vld [vmem:[%s2] sm:$0x1]
    %v59 = vlaneseq
    %v60 = vshrl.u32 %v59, 7
    %v61 = vsub.s32 0, %v60
    %v62 = vrot.slane %v57, %v61
    %vm64 = vcmask 261120
    %v66 = vsel %vm64, %v37, 0
    %v69 = vsel %vm64, %v38, 0
    %v72 = vsel %vm64, %v39, 0
    %v75 = vsel %vm64, %v40, 0
    %v78 = vsel %vm64, %v41, 0
    %v81 = vsel %vm64, %v42, 0
    %v84 = vsel %vm64, %v43, 0
    %v87 = vsel %vm64, %v44, 0
    %v90 = vsel %vm64, %v45, 0
    %v93 = vsel %vm64, %v46, 0
    %v96 = vsel %vm64, %v47, 0
    %v99 = vsel %vm64, %v48, 0
    %v102 = vsel %vm64, %v49, 0
    %v105 = vsel %vm64, %v50, 0
    %v108 = vsel %vm64, %v51, 0
    %v111 = vsel %vm64, %v52, 0
    %113 = vmatprep.subr.mxu0 0.0
    %114 = vmatpush1.msra.mxu0 %v53
    %115 = vmatprep.subr.mxu0 0.0
    %116 = vmatpush1.msra.mxu0 %v54
    %117 = vmatprep.subr.mxu0 0.0
    %118 = vmatpush1.msra.mxu0 %v55
    %119 = vmatprep.subr.mxu0 0.0
    %120 = vmatpush1.msra.mxu0 %v56
    %121 = vmatprep.subr.mxu0 0.0
    %122 = vmatpush1.msra.mxu0 0.0
    %123 = vmatprep.subr.mxu0 0.0
    %124 = vmatpush1.msra.mxu0 0.0
    %125 = vmatprep.subr.mxu0 0.0
    %126 = vmatpush1.msra.mxu0 0.0
    %127 = vmatprep.subr.mxu0 0.0
    %128 = vmatpush1.msra.mxu0 0.0
    %129 = vmatprep.subr.mxu0 0.0
    %130 = vmatpush1.msra.mxu0 0.0
    %131 = vmatprep.subr.mxu0 0.0
    %132 = vmatpush1.msra.mxu0 0.0
    %133 = vmatprep.subr.mxu0 0.0
    %134 = vmatpush1.msra.mxu0 0.0
    %135 = vmatprep.subr.mxu0 0.0
    %136 = vmatpush1.msra.mxu0 0.0
    %137 = vmatprep.subr.mxu0 0.0
    %138 = vmatpush1.msra.mxu0 0.0
    %139 = vmatprep.subr.mxu0 0.0
    %140 = vmatpush1.msra.mxu0 0.0
    %141 = vmatprep.subr.mxu0 0.0
    %142 = vmatpush1.msra.mxu0 0.0
    %143 = vmatprep.subr.mxu0 0.0
    %144 = vmatpush1.msra.mxu0 0.0
    %145 = vmatprep.subr.mxu0 0.0
    %146 = vmatpush1.msra.mxu0 0.0
    %147 = vmatprep.subr.mxu0 0.0
    %148 = vmatpush1.msra.mxu0 0.0
    %149 = vmatprep.subr.mxu0 0.0
    %150 = vmatpush1.msra.mxu0 0.0
    %151 = vmatprep.subr.mxu0 0.0
    %152 = vmatpush1.msra.mxu0 0.0
    %153 = vmatprep.subr.mxu0 0.0
    %154 = vmatpush1.msra.mxu0 0.0
    %155 = vmatprep.subr.mxu0 0.0
    %156 = vmatpush1.msra.mxu0 0.0
    %157 = vmatprep.subr.mxu0 0.0
    %158 = vmatpush1.msra.mxu0 0.0
    %159 = vmatprep.subr.mxu0 0.0
    %160 = vmatpush1.msra.mxu0 0.0
    %161 = vmatprep.subr.mxu0 0.0
    %162 = vmatpush1.msra.mxu0 0.0
    %163 = vmatprep.subr.mxu0 0.0
    %164 = vmatpush1.msra.mxu0 0.0
    %165 = vmatprep.subr.mxu0 0.0
    %166 = vmatpush1.msra.mxu0 0.0
    %167 = vmatprep.subr.mxu0 0.0
    %168 = vmatpush1.msra.mxu0 0.0
    %169 = vmatprep.subr.mxu0 0.0
    %170 = vmatpush1.msra.mxu0 0.0
    %171 = vmatprep.subr.mxu0 0.0
    %172 = vmatpush1.msra.mxu0 0.0
    %173 = vmatprep.subr.mxu0 0.0
    %174 = vmatpush1.msra.mxu0 0.0
    %175 = vmatprep.subr.mxu0 0.0
    %176 = vmatpush1.msra.mxu0 0.0
    %177 = vmatprep.mubr.f32.mxu0 0.0
    %178 = vmatmul.mubr.f32.gmra.mrb[0].mxu0 %v66
    %v179 = vpop.f32.mrb[0].mxu0
    %v180 = vadd.f32 %v62, %v179
    %v181 = vpop.f32.mrb[0].mxu0
    %182 = vmatprep.mubr.f32.mxu0 0.0
    %183 = vmatmul.mubr.f32.gmra.mrb[0].mxu0 %v69
    %v184 = vpop.f32.mrb[0].mxu0
    %v185 = vadd.f32 %v62, %v184
    %v186 = vpop.f32.mrb[0].mxu0
    %187 = vmatprep.mubr.f32.mxu0 0.0
    %188 = vmatmul.mubr.f32.gmra.mrb[0].mxu0 %v72
    %v189 = vpop.f32.mrb[0].mxu0
    %v190 = vadd.f32 %v62, %v189
    %v191 = vpop.f32.mrb[0].mxu0
    %192 = vmatprep.mubr.f32.mxu0 0.0
    %193 = vmatmul.mubr.f32.gmra.mrb[0].mxu0 %v75
    %v194 = vpop.f32.mrb[0].mxu0
    %v195 = vadd.f32 %v62, %v194
    %v196 = vpop.f32.mrb[0].mxu0
    %197 = vmatprep.mubr.f32.mxu0 0.0
    %198 = vmatmul.mubr.f32.gmra.mrb[0].mxu0 %v78
    %v199 = vpop.f32.mrb[0].mxu0
    %v200 = vadd.f32 %v62, %v199
    %v201 = vpop.f32.mrb[0].mxu0
    %202 = vmatprep.mubr.f32.mxu0 0.0
    %203 = vmatmul.mubr.f32.gmra.mrb[0].mxu0 %v81
    %v204 = vpop.f32.mrb[0].mxu0
    %v205 = vadd.f32 %v62, %v204
    %v206 = vpop.f32.mrb[0].mxu0
    %207 = vmatprep.mubr.f32.mxu0 0.0
    %208 = vmatmul.mubr.f32.gmra.mrb[0].mxu0 %v84
    %v209 = vpop.f32.mrb[0].mxu0
    %v210 = vadd.f32 %v62, %v209
    %v211 = vpop.f32.mrb[0].mxu0
    %212 = vmatprep.mubr.f32.mxu0 0.0
    %213 = vmatmul.mubr.f32.gmra.mrb[0].mxu0 %v87
    %v214 = vpop.f32.mrb[0].mxu0
    %v215 = vadd.f32 %v62, %v214
    %v216 = vpop.f32.mrb[0].mxu0
    %217 = vmatprep.mubr.f32.mxu0 0.0
    %218 = vmatmul.mubr.f32.gmra.mrb[0].mxu0 %v90
    %v219 = vpop.f32.mrb[0].mxu0
    %v220 = vadd.f32 %v62, %v219
    %v221 = vpop.f32.mrb[0].mxu0
    %222 = vmatprep.mubr.f32.mxu0 0.0
    %223 = vmatmul.mubr.f32.gmra.mrb[0].mxu0 %v93
    %v224 = vpop.f32.mrb[0].mxu0
    %v225 = vadd.f32 %v62, %v224
    %v226 = vpop.f32.mrb[0].mxu0
    %227 = vmatprep.mubr.f32.mxu0 0.0
    %228 = vmatmul.mubr.f32.gmra.mrb[0].mxu0 %v96
    %v229 = vpop.f32.mrb[0].mxu0
    %v230 = vadd.f32 %v62, %v229
    %v231 = vpop.f32.mrb[0].mxu0
    %232 = vmatprep.mubr.f32.mxu0 0.0
    %233 = vmatmul.mubr.f32.gmra.mrb[0].mxu0 %v99
    %v234 = vpop.f32.mrb[0].mxu0
    %v235 = vadd.f32 %v62, %v234
    %v236 = vpop.f32.mrb[0].mxu0
    %237 = vmatprep.mubr.f32.mxu0 0.0
    %238 = vmatmul.mubr.f32.gmra.mrb[0].mxu0 %v102
    %v239 = vpop.f32.mrb[0].mxu0
    %v240 = vadd.f32 %v62, %v239
    %v241 = vpop.f32.mrb[0].mxu0
    %242 = vmatprep.mubr.f32.mxu0 0.0
    %243 = vmatmul.mubr.f32.gmra.mrb[0].mxu0 %v105
    %v244 = vpop.f32.mrb[0].mxu0
    %v245 = vadd.f32 %v62, %v244
    %v246 = vpop.f32.mrb[0].mxu0
    %247 = vmatprep.mubr.f32.mxu0 0.0
    %248 = vmatmul.mubr.f32.gmra.mrb[0].mxu0 %v108
    %v249 = vpop.f32.mrb[0].mxu0
    %v250 = vadd.f32 %v62, %v249
    %v251 = vpop.f32.mrb[0].mxu0
    %252 = vmatprep.mubr.f32.mxu0 0.0
    %253 = vmatmul.mubr.f32.gmra.mrb[0].mxu0 %v111
    %v254 = vpop.f32.mrb[0].mxu0
    %v255 = vadd.f32 %v62, %v254
    %v256 = vpop.f32.mrb[0].mxu0
    %257 = vdwg.mxu0
    %v258 = vmax.f32 %v180, 0.0
    %v259 = vmax.f32 %v185, 0.0
    %v260 = vmax.f32 %v190, 0.0
    %v261 = vmax.f32 %v195, 0.0
    %v262 = vmax.f32 %v200, 0.0
    %v263 = vmax.f32 %v205, 0.0
    %v264 = vmax.f32 %v210, 0.0
    %v265 = vmax.f32 %v215, 0.0
    %v266 = vmax.f32 %v220, 0.0
    %v267 = vmax.f32 %v225, 0.0
    %v268 = vmax.f32 %v230, 0.0
    %v269 = vmax.f32 %v235, 0.0
    %v270 = vmax.f32 %v240, 0.0
    %v271 = vmax.f32 %v245, 0.0
    %v272 = vmax.f32 %v250, 0.0
    %v273 = vmax.f32 %v255, 0.0
    %vm274 = vcmp.ne.f32.partialorder %v180, %v180
    %vm275 = vcmp.ne.f32.partialorder %v185, %v185
    %vm276 = vcmp.ne.f32.partialorder %v190, %v190
    %vm277 = vcmp.ne.f32.partialorder %v195, %v195
    %vm278 = vcmp.ne.f32.partialorder %v200, %v200
    %vm279 = vcmp.ne.f32.partialorder %v205, %v205
    %vm280 = vcmp.ne.f32.partialorder %v210, %v210
    %vm281 = vcmp.ne.f32.partialorder %v215, %v215
    %vm282 = vcmp.ne.f32.partialorder %v220, %v220
    %vm283 = vcmp.ne.f32.partialorder %v225, %v225
    %vm284 = vcmp.ne.f32.partialorder %v230, %v230
    %vm285 = vcmp.ne.f32.partialorder %v235, %v235
    %vm286 = vcmp.ne.f32.partialorder %v240, %v240
    %vm287 = vcmp.ne.f32.partialorder %v245, %v245
    %vm288 = vcmp.ne.f32.partialorder %v250, %v250
    %vm289 = vcmp.ne.f32.partialorder %v255, %v255
    %v290 = vadd.f32 %v180, 0.0
    %v291 = vadd.f32 %v185, 0.0
    %v292 = vadd.f32 %v190, 0.0
    %v293 = vadd.f32 %v195, 0.0
    %v294 = vadd.f32 %v200, 0.0
    %v295 = vadd.f32 %v205, 0.0
    %v296 = vadd.f32 %v210, 0.0
    %v297 = vadd.f32 %v215, 0.0
    %v298 = vadd.f32 %v220, 0.0
    %v299 = vadd.f32 %v225, 0.0
    %v300 = vadd.f32 %v230, 0.0
    %v301 = vadd.f32 %v235, 0.0
    %v302 = vadd.f32 %v240, 0.0
    %v303 = vadd.f32 %v245, 0.0
    %v304 = vadd.f32 %v250, 0.0
    %v305 = vadd.f32 %v255, 0.0
    %v306 = vand.u32 2147483647, %v180
    %v307 = vand.u32 2147483647, %v185
    %v308 = vand.u32 2147483647, %v190
    %v309 = vand.u32 2147483647, %v195
    %v310 = vand.u32 2147483647, %v200
    %v311 = vand.u32 2147483647, %v205
    %v312 = vand.u32 2147483647, %v210
    %v313 = vand.u32 2147483647, %v215
    %v314 = vand.u32 2147483647, %v220
    %v315 = vand.u32 2147483647, %v225
    %v316 = vand.u32 2147483647, %v230
    %v317 = vand.u32 2147483647, %v235
    %v318 = vand.u32 2147483647, %v240
    %v319 = vand.u32 2147483647, %v245
    %v320 = vand.u32 2147483647, %v250
    %v321 = vand.u32 2147483647, %v255
    %v322 = vsub.f32 0.0, %v306
    %v323 = vsub.f32 0.0, %v307
    %v324 = vsub.f32 0.0, %v308
    %v325 = vsub.f32 0.0, %v309
    %v326 = vsub.f32 0.0, %v310
    %v327 = vsub.f32 0.0, %v311
    %v328 = vsub.f32 0.0, %v312
    %v329 = vsub.f32 0.0, %v313
    %v330 = vsub.f32 0.0, %v314
    %v331 = vsub.f32 0.0, %v315
    %v332 = vsub.f32 0.0, %v316
    %v333 = vsub.f32 0.0, %v317
    %v334 = vsub.f32 0.0, %v318
    %v335 = vsub.f32 0.0, %v319
    %v336 = vsub.f32 0.0, %v320
    %v337 = vsub.f32 0.0, %v321
    %v338 = vmul.f32 %v322, 1.442695
    %v339 = vpow.pop %v338
    %v340 = vmul.f32 %v323, 1.442695
    %v341 = vpow.pop %v340
    %v342 = vmul.f32 %v324, 1.442695
    %v343 = vpow.pop %v342
    %v344 = vmul.f32 %v325, 1.442695
    %v345 = vpow.pop %v344
    %v346 = vmul.f32 %v326, 1.442695
    %v347 = vpow.pop %v346
    %v348 = vmul.f32 %v327, 1.442695
    %v349 = vpow.pop %v348
    %v350 = vmul.f32 %v328, 1.442695
    %v351 = vpow.pop %v350
    %v352 = vmul.f32 %v329, 1.442695
    %v353 = vpow.pop %v352
    %v354 = vmul.f32 %v330, 1.442695
    %v355 = vpow.pop %v354
    %v356 = vmul.f32 %v331, 1.442695
    %v357 = vpow.pop %v356
    %v358 = vmul.f32 %v332, 1.442695
    %v359 = vpow.pop %v358
    %v360 = vmul.f32 %v333, 1.442695
    %v361 = vpow.pop %v360
    %v362 = vmul.f32 %v334, 1.442695
    %v363 = vpow.pop %v362
    %v364 = vmul.f32 %v335, 1.442695
    %v365 = vpow.pop %v364
    %v366 = vmul.f32 %v336, 1.442695
    %v367 = vpow.pop %v366
    %v368 = vmul.f32 %v337, 1.442695
    %v369 = vpow.pop %v368
    %v370 = vadd.f32 %v339, 1.0
    %v371 = vlog2.pop %v370
    %v372 = vmul.f32 %v371, 0.6931472
    %v373 = vmul.f32 -0.5, %v339
    %v374 = vadd.f32 %v373, 1.0
    %v375 = vmul.f32 %v374, %v339
    %v376 = vand.u32 2147483647, %v339
    %vm377 = vcmp.lt.f32.partialorder %v376, 0.0004427343
    %v378 = vsel %vm377, %v375, %v372
    %v379 = vadd.f32 %v341, 1.0
    %v380 = vlog2.pop %v379
    %v381 = vmul.f32 %v380, 0.6931472
    %v382 = vmul.f32 -0.5, %v341
    %v383 = vadd.f32 %v382, 1.0
    %v384 = vmul.f32 %v383, %v341
    %v385 = vand.u32 2147483647, %v341
    %vm386 = vcmp.lt.f32.partialorder %v385, 0.0004427343
    %v387 = vsel %vm386, %v384, %v381
    %v388 = vadd.f32 %v343, 1.0
    %v389 = vlog2.pop %v388
    %v390 = vmul.f32 %v389, 0.6931472
    %v391 = vmul.f32 -0.5, %v343
    %v392 = vadd.f32 %v391, 1.0
    %v393 = vmul.f32 %v392, %v343
    %v394 = vand.u32 2147483647, %v343
    %vm395 = vcmp.lt.f32.partialorder %v394, 0.0004427343
    %v396 = vsel %vm395, %v393, %v390
    %v397 = vadd.f32 %v345, 1.0
    %v398 = vlog2.pop %v397
    %v399 = vmul.f32 %v398, 0.6931472
    %v400 = vmul.f32 -0.5, %v345
    %v401 = vadd.f32 %v400, 1.0
    %v402 = vmul.f32 %v401, %v345
    %v403 = vand.u32 2147483647, %v345
    %vm404 = vcmp.lt.f32.partialorder %v403, 0.0004427343
    %v405 = vsel %vm404, %v402, %v399
    %v406 = vadd.f32 %v347, 1.0
    %v407 = vlog2.pop %v406
    %v408 = vmul.f32 %v407, 0.6931472
    %v409 = vmul.f32 -0.5, %v347
    %v410 = vadd.f32 %v409, 1.0
    %v411 = vmul.f32 %v410, %v347
    %v412 = vand.u32 2147483647, %v347
    %vm413 = vcmp.lt.f32.partialorder %v412, 0.0004427343
    %v414 = vsel %vm413, %v411, %v408
    %v415 = vadd.f32 %v349, 1.0
    %v416 = vlog2.pop %v415
    %v417 = vmul.f32 %v416, 0.6931472
    %v418 = vmul.f32 -0.5, %v349
    %v419 = vadd.f32 %v418, 1.0
    %v420 = vmul.f32 %v419, %v349
    %v421 = vand.u32 2147483647, %v349
    %vm422 = vcmp.lt.f32.partialorder %v421, 0.0004427343
    %v423 = vsel %vm422, %v420, %v417
    %v424 = vadd.f32 %v351, 1.0
    %v425 = vlog2.pop %v424
    %v426 = vmul.f32 %v425, 0.6931472
    %v427 = vmul.f32 -0.5, %v351
    %v428 = vadd.f32 %v427, 1.0
    %v429 = vmul.f32 %v428, %v351
    %v430 = vand.u32 2147483647, %v351
    %vm431 = vcmp.lt.f32.partialorder %v430, 0.0004427343
    %v432 = vsel %vm431, %v429, %v426
    %v433 = vadd.f32 %v353, 1.0
    %v434 = vlog2.pop %v433
    %v435 = vmul.f32 %v434, 0.6931472
    %v436 = vmul.f32 -0.5, %v353
    %v437 = vadd.f32 %v436, 1.0
    %v438 = vmul.f32 %v437, %v353
    %v439 = vand.u32 2147483647, %v353
    %vm440 = vcmp.lt.f32.partialorder %v439, 0.0004427343
    %v441 = vsel %vm440, %v438, %v435
    %v442 = vadd.f32 %v355, 1.0
    %v443 = vlog2.pop %v442
    %v444 = vmul.f32 %v443, 0.6931472
    %v445 = vmul.f32 -0.5, %v355
    %v446 = vadd.f32 %v445, 1.0
    %v447 = vmul.f32 %v446, %v355
    %v448 = vand.u32 2147483647, %v355
    %vm449 = vcmp.lt.f32.partialorder %v448, 0.0004427343
    %v450 = vsel %vm449, %v447, %v444
    %v451 = vadd.f32 %v357, 1.0
    %v452 = vlog2.pop %v451
    %v453 = vmul.f32 %v452, 0.6931472
    %v454 = vmul.f32 -0.5, %v357
    %v455 = vadd.f32 %v454, 1.0
    %v456 = vmul.f32 %v455, %v357
    %v457 = vand.u32 2147483647, %v357
    %vm458 = vcmp.lt.f32.partialorder %v457, 0.0004427343
    %v459 = vsel %vm458, %v456, %v453
    %v460 = vadd.f32 %v359, 1.0
    %v461 = vlog2.pop %v460
    %v462 = vmul.f32 %v461, 0.6931472
    %v463 = vmul.f32 -0.5, %v359
    %v464 = vadd.f32 %v463, 1.0
    %v465 = vmul.f32 %v464, %v359
    %v466 = vand.u32 2147483647, %v359
    %vm467 = vcmp.lt.f32.partialorder %v466, 0.0004427343
    %v468 = vsel %vm467, %v465, %v462
    %v469 = vadd.f32 %v361, 1.0
    %v470 = vlog2.pop %v469
    %v471 = vmul.f32 %v470, 0.6931472
    %v472 = vmul.f32 -0.5, %v361
    %v473 = vadd.f32 %v472, 1.0
    %v474 = vmul.f32 %v473, %v361
    %v475 = vand.u32 2147483647, %v361
    %vm476 = vcmp.lt.f32.partialorder %v475, 0.0004427343
    %v477 = vsel %vm476, %v474, %v471
    %v478 = vadd.f32 %v363, 1.0
    %v479 = vlog2.pop %v478
    %v480 = vmul.f32 %v479, 0.6931472
    %v481 = vmul.f32 -0.5, %v363
    %v482 = vadd.f32 %v481, 1.0
    %v483 = vmul.f32 %v482, %v363
    %v484 = vand.u32 2147483647, %v363
    %vm485 = vcmp.lt.f32.partialorder %v484, 0.0004427343
    %v486 = vsel %vm485, %v483, %v480
    %v487 = vadd.f32 %v365, 1.0
    %v488 = vlog2.pop %v487
    %v489 = vmul.f32 %v488, 0.6931472
    %v490 = vmul.f32 -0.5, %v365
    %v491 = vadd.f32 %v490, 1.0
    %v492 = vmul.f32 %v491, %v365
    %v493 = vand.u32 2147483647, %v365
    %vm494 = vcmp.lt.f32.partialorder %v493, 0.0004427343
    %v495 = vsel %vm494, %v492, %v489
    %v496 = vadd.f32 %v367, 1.0
    %v497 = vlog2.pop %v496
    %v498 = vmul.f32 %v497, 0.6931472
    %v499 = vmul.f32 -0.5, %v367
    %v500 = vadd.f32 %v499, 1.0
    %v501 = vmul.f32 %v500, %v367
    %v502 = vand.u32 2147483647, %v367
    %vm503 = vcmp.lt.f32.partialorder %v502, 0.0004427343
    %v504 = vsel %vm503, %v501, %v498
    %v505 = vadd.f32 %v369, 1.0
    %v506 = vlog2.pop %v505
    %v507 = vmul.f32 %v506, 0.6931472
    %v508 = vmul.f32 -0.5, %v369
    %v509 = vadd.f32 %v508, 1.0
    %v510 = vmul.f32 %v509, %v369
    %v511 = vand.u32 2147483647, %v369
    %vm512 = vcmp.lt.f32.partialorder %v511, 0.0004427343
    %v513 = vsel %vm512, %v510, %v507
    %v514 = vadd.f32 %v258, %v378
    %v515 = vadd.f32 %v259, %v387
    %v516 = vadd.f32 %v260, %v396
    %v517 = vadd.f32 %v261, %v405
    %v518 = vadd.f32 %v262, %v414
    %v519 = vadd.f32 %v263, %v423
    %v520 = vadd.f32 %v264, %v432
    %v521 = vadd.f32 %v265, %v441
    %v522 = vadd.f32 %v266, %v450
    %v523 = vadd.f32 %v267, %v459
    %v524 = vadd.f32 %v268, %v468
    %v525 = vadd.f32 %v269, %v477
    %v526 = vadd.f32 %v270, %v486
    %v527 = vadd.f32 %v271, %v495
    %v528 = vadd.f32 %v272, %v504
    %v529 = vadd.f32 %v273, %v513
    %v530 = vsel %vm274, %v290, %v514
    %v531 = vsel %vm275, %v291, %v515
    %v532 = vsel %vm276, %v292, %v516
    %v533 = vsel %vm277, %v293, %v517
    %v534 = vsel %vm278, %v294, %v518
    %v535 = vsel %vm279, %v295, %v519
    %v536 = vsel %vm280, %v296, %v520
    %v537 = vsel %vm281, %v297, %v521
    %v538 = vsel %vm282, %v298, %v522
    %v539 = vsel %vm283, %v299, %v523
    %v540 = vsel %vm284, %v300, %v524
    %v541 = vsel %vm285, %v301, %v525
    %v542 = vsel %vm286, %v302, %v526
    %v543 = vsel %vm287, %v303, %v527
    %v544 = vsel %vm288, %v304, %v528
    %v545 = vsel %vm289, %v305, %v529
    %v546 = vsub.f32 %v530, 0.6931472
    %v547 = vsub.f32 %v531, 0.6931472
    %v548 = vsub.f32 %v532, 0.6931472
    %v549 = vsub.f32 %v533, 0.6931472
    %v550 = vsub.f32 %v534, 0.6931472
    %v551 = vsub.f32 %v535, 0.6931472
    %v552 = vsub.f32 %v536, 0.6931472
    %v553 = vsub.f32 %v537, 0.6931472
    %v554 = vsub.f32 %v538, 0.6931472
    %v555 = vsub.f32 %v539, 0.6931472
    %v556 = vsub.f32 %v540, 0.6931472
    %v557 = vsub.f32 %v541, 0.6931472
    %v558 = vsub.f32 %v542, 0.6931472
    %v559 = vsub.f32 %v543, 0.6931472
    %v560 = vsub.f32 %v544, 0.6931472
    %v561 = vsub.f32 %v545, 0.6931472
    %v562 = vld [vmem:[%s3] sm:$0x1]
    %v563 = vld [vmem:[%s4] sm:$0x1]
    %vm564 = vcmask 130048
    %v566 = vsel %vm564, %v562, 0
    %v569 = vsel %vm564, %v546, 0
    %v572 = vsel %vm564, %v547, 0
    %v575 = vsel %vm564, %v548, 0
    %v578 = vsel %vm564, %v549, 0
    %v581 = vsel %vm564, %v550, 0
    %v584 = vsel %vm564, %v551, 0
    %v587 = vsel %vm564, %v552, 0
    %v590 = vsel %vm564, %v553, 0
    %v593 = vsel %vm564, %v554, 0
    %v596 = vsel %vm564, %v555, 0
    %v599 = vsel %vm564, %v556, 0
    %v602 = vsel %vm564, %v557, 0
    %v605 = vsel %vm564, %v558, 0
    %v608 = vsel %vm564, %v559, 0
    %v611 = vsel %vm564, %v560, 0
    %v614 = vsel %vm564, %v561, 0
    %616 = vmatprep.subr.mxu0 0.0
    %617 = vmatpush1.xpose.msra.mxu0 %v569
    %618 = vmatprep.subr.mxu0 0.0
    %619 = vmatpush1.xpose.msra.mxu0 %v572
    %620 = vmatprep.subr.mxu0 0.0
    %621 = vmatpush1.xpose.msra.mxu0 %v575
    %622 = vmatprep.subr.mxu0 0.0
    %623 = vmatpush1.xpose.msra.mxu0 %v578
    %624 = vmatprep.subr.mxu0 0.0
    %625 = vmatpush1.xpose.msra.mxu0 %v581
    %626 = vmatprep.subr.mxu0 0.0
    %627 = vmatpush1.xpose.msra.mxu0 %v584
    %628 = vmatprep.subr.mxu0 0.0
    %629 = vmatpush1.xpose.msra.mxu0 %v587
    %630 = vmatprep.subr.mxu0 0.0
    %631 = vmatpush1.xpose.msra.mxu0 %v590
    %632 = vmatprep.subr.mxu0 0.0
    %633 = vmatpush1.xpose.msra.mxu0 %v593
    %634 = vmatprep.subr.mxu0 0.0
    %635 = vmatpush1.xpose.msra.mxu0 %v596
    %636 = vmatprep.subr.mxu0 0.0
    %637 = vmatpush1.xpose.msra.mxu0 %v599
    %638 = vmatprep.subr.mxu0 0.0
    %639 = vmatpush1.xpose.msra.mxu0 %v602
    %640 = vmatprep.subr.mxu0 0.0
    %641 = vmatpush1.xpose.msra.mxu0 %v605
    %642 = vmatprep.subr.mxu0 0.0
    %643 = vmatpush1.xpose.msra.mxu0 %v608
    %644 = vmatprep.subr.mxu0 0.0
    %645 = vmatpush1.xpose.msra.mxu0 %v611
    %646 = vmatprep.subr.mxu0 0.0
    %647 = vmatpush1.xpose.msra.mxu0 %v614
    %648 = vmatprep.subr.mxu0 0.0
    %649 = vmatpush1.xpose.msra.mxu0 0.0
    %650 = vmatprep.subr.mxu0 0.0
    %651 = vmatpush1.xpose.msra.mxu0 0.0
    %652 = vmatprep.subr.mxu0 0.0
    %653 = vmatpush1.xpose.msra.mxu0 0.0
    %654 = vmatprep.subr.mxu0 0.0
    %655 = vmatpush1.xpose.msra.mxu0 0.0
    %656 = vmatprep.subr.mxu0 0.0
    %657 = vmatpush1.xpose.msra.mxu0 0.0
    %658 = vmatprep.subr.mxu0 0.0
    %659 = vmatpush1.xpose.msra.mxu0 0.0
    %660 = vmatprep.subr.mxu0 0.0
    %661 = vmatpush1.xpose.msra.mxu0 0.0
    %662 = vmatprep.subr.mxu0 0.0
    %663 = vmatpush1.xpose.msra.mxu0 0.0
    %664 = vmatprep.subr.mxu0 0.0
    %665 = vmatpush1.xpose.msra.mxu0 0.0
    %666 = vmatprep.subr.mxu0 0.0
    %667 = vmatpush1.xpose.msra.mxu0 0.0
    %668 = vmatprep.subr.mxu0 0.0
    %669 = vmatpush1.xpose.msra.mxu0 0.0
    %670 = vmatprep.subr.mxu0 0.0
    %671 = vmatpush1.xpose.msra.mxu0 0.0
    %672 = vmatprep.subr.mxu0 0.0
    %673 = vmatpush1.xpose.msra.mxu0 0.0
    %674 = vmatprep.subr.mxu0 0.0
    %675 = vmatpush1.xpose.msra.mxu0 0.0
    %676 = vmatprep.subr.mxu0 0.0
    %677 = vmatpush1.xpose.msra.mxu0 0.0
    %678 = vmatprep.subr.mxu0 0.0
    %679 = vmatpush1.xpose.msra.mxu0 0.0
    %680 = vmatprep.mubr.f32.mxu0 0.0
    %681 = vmatmul.mubr.f32.gmra.mrb[0].mxu0 %v566
    %v682 = vpop.f32.mrb[0].mxu0
    %v683 = vadd.f32 %v563, %v682
    %v684 = vpop.f32.mrb[0].mxu0
    %685 = vdwg.mxu0
    %686 = vst [vmem:[#allocation2] sm:$0x1] %v683
    // Predicated region
    $region22: #{tpu_custom_call.1} parent=1 // pred_check
      _
    $region23: #{tpu_custom_call.1} parent=1 // pred_check_branch
      %688 = sbr.rel (0) target = $region25
    $region24: #{tpu_custom_call.1} parent=1 // pred_region
      %s690 = ssub.s32 16, 16
      %691 = vsyncadd [#allocation3], %s690
      %s693 = sshll.u32 [#allocation2], 4
      %s694 = int_to_ptr.vmem [resolvable:$true] %s693
      %696 = dma.vmem_to_hbm [thread:$0]  %s694, 16, %s5, [#allocation3]
    $region25: #{tpu_custom_call.1} parent=1 // pred_fallthru
      _
    // Predicated region
    $region26: #{tpu_custom_call.1} parent=1 // pred_check
      _
    $region27: #{tpu_custom_call.1} parent=1 // pred_check_branch
      %698 = sbr.rel (0) target = $region29
    $region28: #{tpu_custom_call.1} parent=1 // pred_region
      %699 = dma.done [#allocation3], 16
    $region29: #{tpu_custom_call.1} parent=1 // pred_fallthru
      _
    %700 = vsyncpa [#allocation3], 1

</llo_original>
